<compile_context>
chip_gen: v7x
topology: tpu7x:2x2x1
jax: 0.10.0
libtpu: 0.0.40
codegen_flags: <defaults>
</compile_context>

<pallas_src>
import jax
import jax.numpy as jnp
from jax import lax
from jax.experimental import pallas as pl
from jax.experimental.pallas import tpu as pltpu


def _round_up(x, m):
    return ((x + m - 1) // m) * m


def _tpu_flavor():
    try:
        kind = jax.devices()[0].device_kind.lower()
    except Exception:
        kind = ""
    if "v7" in kind:
        return "v7"
    if "v6" in kind:
        return "v6"
    return "v5"


# Generation-aware knobs: fast-path table limit, per-step output VMEM budget,
# DMA inflight depth, scoped-VMEM ceiling, and whether 2 TensorCores exist.
_GEN = {
    "v7": dict(fast_limit=4 << 20, out_budget=12 << 20, inflight=24,
               vmem_cap=48 << 20, two_cores=True),
    "v6": dict(fast_limit=8 << 20, out_budget=20 << 20, inflight=16,
               vmem_cap=96 << 20, two_cores=False),
    "v5": dict(fast_limit=8 << 20, out_budget=16 << 20, inflight=8,
               vmem_cap=96 << 20, two_cores=False),
}


# ----------------------------------------------------------------------------
# Fast path: feature table resident in VMEM, one-hot MXU gather.
# ----------------------------------------------------------------------------
def _make_vmem_gather_kernel(n_rows):
    def kernel(idx_ref, feat_ref, out_ref):
        ids = idx_ref[...]                                        # (tm, 1) int32
        cols = lax.broadcasted_iota(jnp.int32, (ids.shape[0], n_rows), 1)
        onehot = (ids == cols).astype(feat_ref.dtype)             # (tm, N)
        out_ref[...] = jnp.dot(
            onehot, feat_ref[...],
            preferred_element_type=jnp.float32).astype(out_ref.dtype)
    return kernel


def _vmem_gather(feature, idx, m, cfg, block_rows):
    n, f = feature.shape
    itemsize = jnp.dtype(feature.dtype).itemsize

    # keep the (tm, N) one-hot intermediate around ~2 MiB
    onehot_cap = max(8, ((2 << 20) // (4 * max(n, 1))) // 8 * 8)
    tm = max(8, min(block_rows or 256, _round_up(m, 8), onehot_cap))
    if cfg["two_cores"] and m > 8:                    # give both v7x TCs a tile
        tm = min(tm, _round_up((m + 1) // 2, 8))
    tm = max(8, (tm // 8) * 8)

    m_pad = _round_up(m, tm)
    if m_pad != m:
        idx = jnp.concatenate([idx, jnp.zeros((m_pad - m,), jnp.int32)])
    idx2d = idx.reshape(m_pad, 1)

    need = (2 * n * f * itemsize + 2 * tm * f * itemsize
            + tm * n * 4 + 2 * tm * 4 + (2 << 20))
    vmem_limit = int(min(cfg["vmem_cap"], max(need, 16 << 20)))

    out = pl.pallas_call(
        _make_vmem_gather_kernel(n),
        out_shape=jax.ShapeDtypeStruct((m_pad, f), feature.dtype),
        grid=(m_pad // tm,),
        in_specs=[
            pl.BlockSpec((tm, 1), lambda g: (g, 0)),       # per-tile indices
            pl.BlockSpec((n, f), lambda g: (0, 0)),        # whole table, resident
        ],
        out_specs=pl.BlockSpec((tm, f), lambda g: (g, 0)),
        compiler_params=pltpu.CompilerParams(
            dimension_semantics=("parallel",),
            vmem_limit_bytes=vmem_limit),
        cost_estimate=pl.CostEstimate(
            flops=2 * m_pad * n * f,
            bytes_accessed=n * f * itemsize + m_pad * f * itemsize + m_pad * 4,
            transcendentals=0),
    )(idx2d, feature)
    return out[:m] if m_pad != m else out


# ----------------------------------------------------------------------------
# HBM path: per-row DMAs straight into the pipelined output block.
# ----------------------------------------------------------------------------
def _make_hbm_gather_kernel(tm, k, m, m_pad):
    n_prime = min(k, tm)

    def kernel(idx_ref, feat_hbm, out_ref, sems):
        # idx_ref: SMEM int32[m_pad]; feat_hbm: HBM [N, F]; out_ref: VMEM [tm, F]
        base = pl.program_id(0) * tm

        def row_of(j_abs):
            # clamp so speculative (hoisted) SMEM reads never go past idx
            return idx_ref[jnp.minimum(j_abs, m_pad - 1)]

        def copy_for(j, row, slot):
            # DMA row straight into the output tile (no staging buffer)
            return pltpu.make_async_copy(
                feat_hbm.at[row], out_ref.at[j], sems.at[slot])

        # Prime: issue up to k outstanding row gathers (skip padding rows).
        def prime(j, c):
            row = row_of(base + j)

            @pl.when(base + j < m)
            def _():
                copy_for(j, row, j % k).start()
            return c

        lax.fori_loop(0, n_prime, prime, 0, unroll=True)

        # Steady state: wait copy j (exact descriptor), reissue copy j+k.
        def steady(j, c):
            slot = j % k
            # hoist SMEM index reads above the wait (wait breaks sst->sld fwd)
            row_j = row_of(base + j)
            row_n = row_of(base + j + k)
            valid_j = base + j < m
            valid_n = jnp.logical_and(j + k < tm, base + j + k < m)

            @pl.when(valid_j)
            def _():
                copy_for(j, row_j, slot).wait()

            @pl.when(valid_n)
            def _():
                copy_for(j + k, row_n, slot).start()
            return c

        lax.fori_loop(0, tm, steady, 0, unroll=8)

    return kernel


def _hbm_gather(feature, idx, m, cfg, block_rows, max_inflight):
    n, f = feature.shape
    itemsize = jnp.dtype(feature.dtype).itemsize

    # VMEM/step ~= 2 (double-buffered out tile) * tm * F * itemsize
    budget_cap = max(8, (cfg["out_budget"] // (2 * f * itemsize)) // 8 * 8)
    tm = max(8, min(block_rows or 2048, budget_cap, _round_up(m, 8)))
    if cfg["two_cores"] and m > 8:                    # grid >= 2 for v7x megacore
        tm = min(tm, _round_up((m + 1) // 2, 8))
    tm = max(8, (tm // 8) * 8)

    m_pad = _round_up(m, tm)
    if m_pad != m:
        idx = jnp.concatenate([idx, jnp.zeros((m_pad - m,), jnp.int32)])

    k = max(1, min(max_inflight or cfg["inflight"], tm))

    need = 2 * tm * f * itemsize + (4 << 20)
    vmem_limit = int(min(cfg["vmem_cap"], max(need, 16 << 20)))

    # TODO(synk): for very large M, switch the idx operand from whole-array
    # scalar prefetch to per-tile SMEM blocks so SMEM cannot overflow.
    out = pl.pallas_call(
        _make_hbm_gather_kernel(tm, k, m, m_pad),
        out_shape=jax.ShapeDtypeStruct((m_pad, f), feature.dtype),
        grid_spec=pltpu.PrefetchScalarGridSpec(
            num_scalar_prefetch=1,                          # idx -> SMEM
            grid=(m_pad // tm,),
            in_specs=[pl.BlockSpec(memory_space=pl.ANY)],   # feature stays in HBM
            out_specs=pl.BlockSpec((tm, f), lambda g, idx_ref: (g, 0)),
            scratch_shapes=[pltpu.SemaphoreType.DMA((k,))], # k in-flight row DMAs
        ),
        compiler_params=pltpu.CompilerParams(
            dimension_semantics=("parallel",),
            vmem_limit_bytes=vmem_limit),
        cost_estimate=pl.CostEstimate(
            flops=0,
            bytes_accessed=2 * m_pad * f * itemsize + m_pad * 4,
            transcendentals=0),
    )(idx, feature)
    return out[:m] if m_pad != m else out


# ----------------------------------------------------------------------------
# Module-equivalent forward.
# ----------------------------------------------------------------------------
def identify_base_sg_forward(feature, idx, ori=None, *, block_rows=None,
                             max_inflight=None, force_hbm_gather=False):
    """JAX/Pallas equivalent of IdentifyBaseSGModel.forward.

    feature: [N, F] (self.processed_feature, already on device)
    idx:     [M]    node indices to select
    ori:     optional query_edges; when given the full (identity) output is
             returned, matching the `return output` branch.
    """
    n, f = feature.shape
    if ori is not None:
        # query_edges path: identity base-model output returned unsliced.
        return feature

    idx = jnp.asarray(idx).astype(jnp.int32)
    # Torch-style negative indexing, then clamp so no row access can go OOB.
    idx = jnp.where(idx < 0, idx + n, idx)
    idx = jnp.clip(idx, 0, n - 1)
    m = int(idx.shape[0])
    if m == 0:
        return jnp.zeros((0, f), feature.dtype)

    cfg = _GEN[_tpu_flavor()]
    itemsize = jnp.dtype(feature.dtype).itemsize
    use_fast = (not force_hbm_gather) and (n * f * itemsize <= cfg["fast_limit"])
    if use_fast:
        return _vmem_gather(feature, idx, m, cfg, block_rows)
    return _hbm_gather(feature, idx, m, cfg, block_rows, max_inflight)


# TODO(synk): preprocess() (scipy csr adjacency construction/validation) and
# postprocess() (softmax + sparse graph propagation on host numpy) are
# host-side graph plumbing outside the device forward pass and are not ported.
# TODO(synk): optional run-coalescing of contiguous idx ranges into multi-row
# DMAs (bandwidth- instead of descriptor-bound large gathers) is not done.


if __name__ == "__main__":
    key = jax.random.PRNGKey(0)
    k_feat, k_idx = jax.random.split(key)

    n_nodes, feat_dim = 64, 128      # lane-aligned node-feature matrix
    n_idx = 20                       # not a multiple of the row tile -> pads

    feature = jax.random.normal(k_feat, (n_nodes, feat_dim), dtype=jnp.float32)
    idx = jax.random.randint(k_idx, (n_idx,), 0, n_nodes, dtype=jnp.int32)
    ref = feature[idx]

    # 1) VMEM fast path (table fits on-chip -> one-hot MXU gather).
    out_fast = jax.block_until_ready(identify_base_sg_forward(feature, idx))
    assert out_fast.shape == (n_idx, feat_dim)
    assert out_fast.dtype == feature.dtype
    assert jnp.allclose(out_fast, ref), "fast-path mismatch vs reference gather"

    # 2) HBM-resident path (per-row DMAs straight into the output tile);
    #    small block_rows so multiple grid steps + padding are exercised.
    out_hbm = jax.block_until_ready(
        identify_base_sg_forward(feature, idx, force_hbm_gather=True,
                                 block_rows=8))
    assert out_hbm.shape == (n_idx, feat_dim)
    assert jnp.allclose(out_hbm, ref), "hbm-path mismatch vs reference gather"

    # 3) query_edges (`ori`) branch: full identity output is returned.
    out_full = jax.block_until_ready(
        identify_base_sg_forward(feature, idx, ori=jnp.zeros((1, 2), jnp.int32)))
    assert jnp.allclose(out_full, feature)

    print("KERNEL_OK")
</pallas_src>

<mosaic_0001>
module attributes {stable_mosaic.version = 11 : i64} {
  func.func @kernel(%arg0: i32, %arg1: memref<24x1xi32, #tpu.memory_space<vmem>>, %arg2: memref<64x128xf32, #tpu.memory_space<vmem>>, %arg3: memref<24x128xf32, #tpu.memory_space<vmem>>) attributes {dimension_semantics = [#tpu.dimension_semantics<parallel>], iteration_bounds = array<i64: 1>, scalar_prefetch = 0 : i64, scratch_operands = 0 : i64, tpu.core_type = #tpu.core_type<tc>, window_params = [{transform_indices = @transform_0, window_bounds = array<i64: 24, 1>}, {pipeline_mode = #tpu.pipeline_mode<synchronous>, transform_indices = @transform_1, window_bounds = array<i64: 64, 128>}, {transform_indices = @transform_2, window_bounds = array<i64: 24, 128>}]} {
    %c0 = arith.constant 0 : index
    %c0_0 = arith.constant 0 : index
    %0 = vector.load %arg1[%c0, %c0_0] : memref<24x1xi32, #tpu.memory_space<vmem>>, vector<24x1xi32>
    %1 = tpu.iota {dimensions = array<i32: 1>} : vector<24x64xi32>
    %2 = vector.broadcast %0 : vector<24x1xi32> to vector<24x64xi32>
    %3 = arith.cmpi eq, %2, %1 : vector<24x64xi32>
    %4 = arith.extui %3 : vector<24x64xi1> to vector<24x64xi32>
    %5 = arith.sitofp %4 : vector<24x64xi32> to vector<24x64xf32>
    %c0_1 = arith.constant 0 : index
    %c0_2 = arith.constant 0 : index
    %6 = vector.load %arg2[%c0_1, %c0_2] : memref<64x128xf32, #tpu.memory_space<vmem>>, vector<64x128xf32>
    %cst = arith.constant dense<0.000000e+00> : vector<24x128xf32>
    %7 = tpu.matmul %5, %6, %cst {dimension_numbers = #tpu.dot_dimension_numbers<[1], [0], [0], [1], [0, 0, 1, 1], [], []>} : vector<24x64xf32>, vector<64x128xf32>, vector<24x128xf32> -> vector<24x128xf32>
    %c0_3 = arith.constant 0 : index
    %c0_4 = arith.constant 0 : index
    %8 = vector.load %arg3[%c0_3, %c0_4] : memref<24x128xf32, #tpu.memory_space<vmem>>, vector<24x128xf32>
    tpu.vector_store %arg3[%c0_3, %c0_4], %7 {strides = array<i32>} : memref<24x128xf32, #tpu.memory_space<vmem>>, vector<24x128xf32>,
    return
  }
  func.func @transform_0(%arg0: i32) -> (i32, i32) {
    %c0_i32 = arith.constant 0 : i32
    %c0_i32_0 = arith.constant 0 : i32
    return %arg0, %c0_i32 : i32, i32
  }
  func.func @transform_1(%arg0: i32) -> (i32, i32) {
    %c0_i32 = arith.constant 0 : i32
    %c0_i32_0 = arith.constant 0 : i32
    %c0_i32_1 = arith.constant 0 : i32
    return %c0_i32, %c0_i32_0 : i32, i32
  }
  func.func @transform_2(%arg0: i32) -> (i32, i32) {
    %c0_i32 = arith.constant 0 : i32
    %c0_i32_0 = arith.constant 0 : i32
    return %arg0, %c0_i32 : i32, i32
  }
}

</mosaic_0001>

<llo_original>
// kernel: tpu_custom_call.1
$region0: #{tpu_custom_call.1}
  #allocation0 [shape = 'u32[]', space=smem, size = 0x4, offset = 0x4, fixed_abs, tag = 'smem constant byte address 0x4 - core index']
  #allocation1 [shape = 'u32[144,128]{1,0:T(1,128)}', space=vmem, size = 0x12000, scoped, tag = 'internal scratch']
  %s0 = inlined_call_operand.vmem [shape: s32[24,1], index: 0, kind: input, shape index: {}]
  %s1 = inlined_call_operand.hbm [shape: f32[64,128], index: 1, kind: input, shape index: {}]
  %s2 = inlined_call_operand.hbm [shape: f32[24,128], index: 2, kind: output, shape index: {}]
  %s3 = sld [smem:[#allocation0]]
  $region22: #{tpu_custom_call.1} parent=0
    _
  %s5 = ssub.s32 1, %s3
  %s6 = scalar_select 0, %s5, %s3
  $region1: #{tpu_custom_call.1} parent=0
    #allocation2 [shape = 'u8[32768]{0}', space=vmem, size = 0x8000, scoped, tag = 'input window, operand 1, single buffered']
    #allocation3 [shape = 's32[1]{0}', space=sflag, size = 0x4, scoped, tag = 'scoped memory for tpu_custom_call.1']
    #allocation4 [shape = 's32[1]{0}', space=sflag, size = 0x4, scoped, tag = 'scoped memory for tpu_custom_call.1']
    #allocation5 [shape = 'u8[12288]{0}', space=vmem, size = 0x3000, scoped, tag = 'output window, operand 0, single buffered']
    %7 = vsyncpa [#allocation3], 0
    %8 = vsyncpa [#allocation4], 0
    // Predicated region
    $region2: #{tpu_custom_call.1} parent=1 // pred_check
      _
    $region3: #{tpu_custom_call.1} parent=1 // pred_check_branch
      %10 = sbr.rel (0) target = $region5
    $region4: #{tpu_custom_call.1} parent=1 // pred_region
      _
    $region5: #{tpu_custom_call.1} parent=1 // pred_fallthru
      _
    // Predicated region
    $region6: #{tpu_custom_call.1} parent=1 // pred_check
      _
    $region7: #{tpu_custom_call.1} parent=1 // pred_check_branch
      %12 = sbr.rel (0) target = $region9
    $region8: #{tpu_custom_call.1} parent=1 // pred_region
      %s14 = ssub.s32 1024, 1024
      %15 = vsyncadd [#allocation3], %s14
      %s16 = sshll.u32 [#allocation2], 4
      %s17 = int_to_ptr.vmem [resolvable:$true] %s16
      %22 = dma.hbm_to_vmem [thread:$0]  %s1, 1024, %s17, [#allocation3], 128, 128, 8
    $region9: #{tpu_custom_call.1} parent=1 // pred_fallthru
      _
    // Predicated region
    $region10: #{tpu_custom_call.1} parent=1 // pred_check
      _
    $region11: #{tpu_custom_call.1} parent=1 // pred_check_branch
      %24 = sbr.rel (0) target = $region13
    $region12: #{tpu_custom_call.1} parent=1 // pred_region
      %25 = dma.done [#allocation3], 1024
    $region13: #{tpu_custom_call.1} parent=1 // pred_fallthru
      _
    %v26 = vld [vmem:[%s0] sm:$0xff]
    %v27 = vld [vmem:[%s0 + $0x8] sm:$0xff]
    %v28 = vld [vmem:[%s0 + $0x10] sm:$0xff]
    %v29 = vlaneseq
    %v30 = vand.u32 %v29, 127
    %31 = vset.pattern.permute.xlu0 0
    %32 = vperm.xlu0 %31, %v26
    %v33 = vpop.permute.xlu0 %32
    %34 = vset.pattern.permute.xlu0 0
    %35 = vperm.xlu0 %34, %v27
    %v36 = vpop.permute.xlu0 %35
    %37 = vset.pattern.permute.xlu0 0
    %38 = vperm.xlu0 %37, %v28
    %v39 = vpop.permute.xlu0 %38
    %vm40 = vcmp.eq.s32.totalorder %v33, %v30
    %vm41 = vcmp.eq.s32.totalorder %v36, %v30
    %vm42 = vcmp.eq.s32.totalorder %v39, %v30
    %v43 = vsel %vm40, 1, 0
    %v44 = vsel %vm41, 1, 0
    %v45 = vsel %vm42, 1, 0
    %v46 = vcvt.s32.f32 %v43
    %v47 = vcvt.s32.f32 %v44
    %v48 = vcvt.s32.f32 %v45
    %v49 = vld [vmem:[#allocation2] sm:$0xff]
    %v50 = vld [vmem:[#allocation2 + $0x8] sm:$0xff]
    %v51 = vld [vmem:[#allocation2 + $0x10] sm:$0xff]
    %v52 = vld [vmem:[#allocation2 + $0x18] sm:$0xff]
    %v53 = vld [vmem:[#allocation2 + $0x20] sm:$0xff]
    %v54 = vld [vmem:[#allocation2 + $0x28] sm:$0xff]
    %v55 = vld [vmem:[#allocation2 + $0x30] sm:$0xff]
    %v56 = vld [vmem:[#allocation2 + $0x38] sm:$0xff]
    %vm57 = vcmask 523264
    %v59 = vsel %vm57, %v46, 0
    %v62 = vsel %vm57, %v47, 0
    %v65 = vsel %vm57, %v48, 0
    %67 = vmatprep.subr.mxu0 0.0
    %68 = vmatpush1.msra.mxu0 %v49
    %69 = vmatprep.subr.mxu0 0.0
    %70 = vmatpush1.msra.mxu0 %v50
    %71 = vmatprep.subr.mxu0 0.0
    %72 = vmatpush1.msra.mxu0 %v51
    %73 = vmatprep.subr.mxu0 0.0
    %74 = vmatpush1.msra.mxu0 %v52
    %75 = vmatprep.subr.mxu0 0.0
    %76 = vmatpush1.msra.mxu0 %v53
    %77 = vmatprep.subr.mxu0 0.0
    %78 = vmatpush1.msra.mxu0 %v54
    %79 = vmatprep.subr.mxu0 0.0
    %80 = vmatpush1.msra.mxu0 %v55
    %81 = vmatprep.subr.mxu0 0.0
    %82 = vmatpush1.msra.mxu0 %v56
    %83 = vmatprep.subr.mxu0 0.0
    %84 = vmatpush1.msra.mxu0 0.0
    %85 = vmatprep.subr.mxu0 0.0
    %86 = vmatpush1.msra.mxu0 0.0
    %87 = vmatprep.subr.mxu0 0.0
    %88 = vmatpush1.msra.mxu0 0.0
    %89 = vmatprep.subr.mxu0 0.0
    %90 = vmatpush1.msra.mxu0 0.0
    %91 = vmatprep.subr.mxu0 0.0
    %92 = vmatpush1.msra.mxu0 0.0
    %93 = vmatprep.subr.mxu0 0.0
    %94 = vmatpush1.msra.mxu0 0.0
    %95 = vmatprep.subr.mxu0 0.0
    %96 = vmatpush1.msra.mxu0 0.0
    %97 = vmatprep.subr.mxu0 0.0
    %98 = vmatpush1.msra.mxu0 0.0
    %99 = vmatprep.subr.mxu0 0.0
    %100 = vmatpush1.msra.mxu0 0.0
    %101 = vmatprep.subr.mxu0 0.0
    %102 = vmatpush1.msra.mxu0 0.0
    %103 = vmatprep.subr.mxu0 0.0
    %104 = vmatpush1.msra.mxu0 0.0
    %105 = vmatprep.subr.mxu0 0.0
    %106 = vmatpush1.msra.mxu0 0.0
    %107 = vmatprep.subr.mxu0 0.0
    %108 = vmatpush1.msra.mxu0 0.0
    %109 = vmatprep.subr.mxu0 0.0
    %110 = vmatpush1.msra.mxu0 0.0
    %111 = vmatprep.subr.mxu0 0.0
    %112 = vmatpush1.msra.mxu0 0.0
    %113 = vmatprep.subr.mxu0 0.0
    %114 = vmatpush1.msra.mxu0 0.0
    %115 = vmatprep.subr.mxu0 0.0
    %116 = vmatpush1.msra.mxu0 0.0
    %117 = vmatprep.subr.mxu0 0.0
    %118 = vmatpush1.msra.mxu0 0.0
    %119 = vmatprep.subr.mxu0 0.0
    %120 = vmatpush1.msra.mxu0 0.0
    %121 = vmatprep.subr.mxu0 0.0
    %122 = vmatpush1.msra.mxu0 0.0
    %123 = vmatprep.subr.mxu0 0.0
    %124 = vmatpush1.msra.mxu0 0.0
    %125 = vmatprep.subr.mxu0 0.0
    %126 = vmatpush1.msra.mxu0 0.0
    %127 = vmatprep.subr.mxu0 0.0
    %128 = vmatpush1.msra.mxu0 0.0
    %129 = vmatprep.subr.mxu0 0.0
    %130 = vmatpush1.msra.mxu0 0.0
    %131 = vmatprep.mubr.f32.mxu0 0.0
    %132 = vmatmul.mubr.f32.gmra.mrb[0].mxu0 %v59
    %v133 = vpop.f32.mrb[0].mxu0
    %v134 = vadd.f32 0.0, %v133
    %v135 = vpop.f32.mrb[0].mxu0
    %136 = vmatprep.mubr.f32.mxu0 0.0
    %137 = vmatmul.mubr.f32.gmra.mrb[0].mxu0 %v62
    %v138 = vpop.f32.mrb[0].mxu0
    %v139 = vadd.f32 0.0, %v138
    %v140 = vpop.f32.mrb[0].mxu0
    %141 = vmatprep.mubr.f32.mxu0 0.0
    %142 = vmatmul.mubr.f32.gmra.mrb[0].mxu0 %v65
    %v143 = vpop.f32.mrb[0].mxu0
    %v144 = vadd.f32 0.0, %v143
    %v145 = vpop.f32.mrb[0].mxu0
    %146 = vdwg.mxu0
    %147 = vst [vmem:[#allocation5] sm:$0xff] %v134
    %148 = vst [vmem:[#allocation5 + $0x8] sm:$0xff] %v139
    %149 = vst [vmem:[#allocation5 + $0x10] sm:$0xff] %v144
    // Predicated region
    $region14: #{tpu_custom_call.1} parent=1 // pred_check
      _
    $region15: #{tpu_custom_call.1} parent=1 // pred_check_branch
      %151 = sbr.rel (0) target = $region17
    $region16: #{tpu_custom_call.1} parent=1 // pred_region
      %s153 = ssub.s32 384, 384
      %154 = vsyncadd [#allocation4], %s153
      %s155 = sshll.u32 [#allocation5], 4
      %s156 = int_to_ptr.vmem [resolvable:$true] %s155
      %161 = dma.vmem_to_hbm [thread:$0]  %s156, 384, %s2, [#allocation4], 128, 128, 8
    $region17: #{tpu_custom_call.1} parent=1 // pred_fallthru
      _
    // Predicated region
    $region18: #{tpu_custom_call.1} parent=1 // pred_check
      _
    $region19: #{tpu_custom_call.1} parent=1 // pred_check_branch
      %163 = sbr.rel (0) target = $region21
    $region20: #{tpu_custom_call.1} parent=1 // pred_region
      %164 = dma.done [#allocation4], 384
    $region21: #{tpu_custom_call.1} parent=1 // pred_fallthru
      _
    %165 = vsyncpa [#allocation3], 1
    %166 = vsyncpa [#allocation4], 1

</llo_original>
